<compile_context>
chip_gen: v5e
topology: v5e:2x2
jax: 0.10.0
libtpu: 0.0.40
codegen_flags: <defaults>
</compile_context>

<pallas_src>
import functools

import jax
import jax.numpy as jnp
from jax.experimental import pallas as pl
from jax.experimental.pallas import tpu as pltpu

LANE = 128  # TPU lane width; padded feature dims are multiples of this.


def mlp_kernel(x_ref, w1_ref, b1_ref, w2_ref, b2_ref, o_ref):
    # Cast activations to bf16 here (not in the wrapper) so HBM only ever sees
    # the original unpadded f32 x; weights arrive pre-cast/pre-padded.
    x = x_ref[...].astype(w1_ref.dtype)
    # Layer 1: Linear (K=32 -> 128 padded hidden). f32 MXU accumulation.
    h = jnp.dot(x, w1_ref[...], preferred_element_type=jnp.float32)
    h = jnp.maximum(h + b1_ref[...], 0.0)          # bias + ReLU in f32 (VPU)
    # Layer 2: Linear (128 -> 128 padded classes).
    out = jnp.dot(h.astype(w2_ref.dtype), w2_ref[...],
                  preferred_element_type=jnp.float32)
    # Lane-dense 128-wide store; bf16 halves the dominant HBM writeback stream.
    o_ref[...] = (out + b2_ref[...]).astype(o_ref.dtype)


def _pad_to(arr, shape):
    pads = [(0, s - d) for d, s in zip(arr.shape, shape)]
    return jnp.pad(arr, pads)


def prepare_params(w1, b1, w2, b2):
    """One-time parameter prep (hoisted out of the per-call forward).

    Weights are expected pre-transposed to (in_features, out_features), so the
    kernel computes plain `x @ W + b` (== PyTorch's `x @ W.T + b`).
    Hidden / class dims are zero-padded to lane multiples; matmul operands are
    cast to bf16 once here, biases stay f32 for the VPU epilogue.
    """
    in_features, hidden = w1.shape
    num_classes = w2.shape[1]
    hid_p = pl.cdiv(hidden, LANE) * LANE
    out_p = pl.cdiv(num_classes, LANE) * LANE

    w1_p = _pad_to(w1, (in_features, hid_p)).astype(jnp.bfloat16)
    b1_p = _pad_to(b1.reshape(1, -1), (1, hid_p)).astype(jnp.float32)
    w2_p = _pad_to(w2, (hid_p, out_p)).astype(jnp.bfloat16)
    b2_p = _pad_to(b2.reshape(1, -1), (1, out_p)).astype(jnp.float32)
    return w1_p, b1_p, w2_p, b2_p


@functools.partial(jax.jit, static_argnames=("num_classes", "block_batch"))
def sequential_mlp_forward(x, w1_p, b1_p, w2_p, b2_p, *, num_classes,
                           block_batch=512):
    """Fused forward of Sequential(Linear, ReLU, Linear) as one Pallas call."""
    batch, in_features = x.shape
    hid_p = w1_p.shape[1]
    out_p = w2_p.shape[1]

    # Batch tiling: large tiles amortize the ~0.35us per-step overhead, but keep
    # at least 2 grid steps when possible so v7x's second TensorCore gets work.
    tb = block_batch
    if batch <= tb:
        tb = max(8, pl.cdiv(pl.cdiv(batch, 2), 8) * 8)
    b_p = pl.cdiv(batch, tb) * tb
    n_tiles = b_p // tb

    # Only pad batch rows (rarely needed); feature dim of x stays at its true
    # size — allowed because the block's last dim equals the full array dim.
    x_p = x if b_p == batch else jnp.pad(x, ((0, b_p - batch), (0, 0)))

    y_full = pl.pallas_call(
        mlp_kernel,
        out_shape=jax.ShapeDtypeStruct((b_p, out_p), jnp.bfloat16),
        grid=(n_tiles,),
        in_specs=[
            pl.BlockSpec((tb, in_features), lambda i: (i, 0)),  # x: tiled on batch
            pl.BlockSpec((in_features, hid_p), lambda i: (0, 0)),  # W1: VMEM-resident
            pl.BlockSpec((1, hid_p), lambda i: (0, 0)),             # b1
            pl.BlockSpec((hid_p, out_p), lambda i: (0, 0)),         # W2
            pl.BlockSpec((1, out_p), lambda i: (0, 0)),             # b2
        ],
        out_specs=pl.BlockSpec((tb, out_p), lambda i: (i, 0)),
        compiler_params=pltpu.CompilerParams(
            dimension_semantics=("parallel",),   # shard batch tiles across TCs (v7x)
            vmem_limit_bytes=16 << 20,           # small & safe; footprint << 1 MiB
        ),
    )(x_p, w1_p, b1_p, w2_p, b2_p)

    # Slice away batch/class padding (pads are zero, nothing leaks); return f32
    # to match the PyTorch module's output dtype.  The slice touches only the
    # 10 live lanes per row, not the padded 128-wide slab.
    return y_full[:batch, :num_classes].astype(jnp.float32)


def init_linear_params(key, in_features, out_features, dtype=jnp.float32):
    """Deterministic PyTorch-style init: U(-1/sqrt(in), 1/sqrt(in)).

    Weight is returned already transposed to (in_features, out_features).
    """
    kw, kb = jax.random.split(key)
    bound = 1.0 / (in_features ** 0.5)
    w = jax.random.uniform(kw, (in_features, out_features), dtype,
                           minval=-bound, maxval=bound)
    b = jax.random.uniform(kb, (out_features,), dtype,
                           minval=-bound, maxval=bound)
    return w, b


# TODO(synk): the PyTorch Model's fit/train_process/evaluate/predict methods are
# host-side training orchestration (optimizer, DataLoader loops) with no Pallas
# equivalent; only forward() is implemented as a kernel.

if __name__ == "__main__":
    # Shapes consistent with the classifier forward pass; batch sized so the
    # grid has 2 tiles of 512 rows (amortizes step overhead, keeps both v7x TCs
    # busy) while remaining tiny (~128 KiB of activations).
    batch, in_features, hidden, num_classes = 1024, 32, 64, 10

    key = jax.random.PRNGKey(0)
    kx, k1, k2 = jax.random.split(key, 3)

    x = jax.random.normal(kx, (batch, in_features), jnp.float32)
    w1, b1 = init_linear_params(k1, in_features, hidden)
    w2, b2 = init_linear_params(k2, hidden, num_classes)

    # One-time parameter preparation (not inside the per-call forward).
    params = prepare_params(w1, b1, w2, b2)

    y = sequential_mlp_forward(x, *params, num_classes=num_classes,
                               block_batch=512)
    y = jax.block_until_ready(y)
    assert y.shape == (batch, num_classes)

    # Matched-precision reference (bf16 matmul operands + bf16 output rounding,
    # f32 accumulation) — should agree closely with the kernel.
    f32 = jnp.float32
    xb = x.astype(jnp.bfloat16).astype(f32)
    w1b = w1.astype(jnp.bfloat16).astype(f32)
    w2b = w2.astype(jnp.bfloat16).astype(f32)
    h_ref = jnp.maximum(xb @ w1b + b1, 0.0)
    out_ref = h_ref.astype(jnp.bfloat16).astype(f32) @ w2b + b2
    ref_matched = out_ref.astype(jnp.bfloat16).astype(f32)
    assert jnp.allclose(y, ref_matched, atol=2e-2, rtol=2e-2)

    # Loose check against the exact f32 math of the PyTorch Sequential.
    ref_f32 = jnp.maximum(x @ w1 + b1, 0.0) @ w2 + b2
    assert jnp.allclose(y, ref_f32, atol=6e-2, rtol=6e-2)

    print("KERNEL_OK")
</pallas_src>

<mosaic_0001>
module attributes {stable_mosaic.version = 11 : i64} {
  func.func @mlp_kernel(%arg0: i32, %arg1: memref<512x32xf32, #tpu.memory_space<vmem>>, %arg2: memref<32x128xbf16, #tpu.memory_space<vmem>>, %arg3: memref<1x128xf32, #tpu.memory_space<vmem>>, %arg4: memref<128x128xbf16, #tpu.memory_space<vmem>>, %arg5: memref<1x128xf32, #tpu.memory_space<vmem>>, %arg6: memref<512x128xbf16, #tpu.memory_space<vmem>>) attributes {dimension_semantics = [#tpu.dimension_semantics<parallel>], iteration_bounds = array<i64: 2>, scalar_prefetch = 0 : i64, scratch_operands = 0 : i64, tpu.core_type = #tpu.core_type<tc>, window_params = [{transform_indices = @transform_0, window_bounds = array<i64: 512, 32>}, {pipeline_mode = #tpu.pipeline_mode<synchronous>, transform_indices = @transform_1, window_bounds = array<i64: 32, 128>}, {pipeline_mode = #tpu.pipeline_mode<synchronous>, transform_indices = @transform_2, window_bounds = array<i64: 1, 128>}, {pipeline_mode = #tpu.pipeline_mode<synchronous>, transform_indices = @transform_3, window_bounds = array<i64: 128, 128>}, {pipeline_mode = #tpu.pipeline_mode<synchronous>, transform_indices = @transform_4, window_bounds = array<i64: 1, 128>}, {transform_indices = @transform_5, window_bounds = array<i64: 512, 128>}]} {
    %c0 = arith.constant 0 : index
    %c0_0 = arith.constant 0 : index
    %0 = vector.load %arg1[%c0, %c0_0] : memref<512x32xf32, #tpu.memory_space<vmem>>, vector<512x32xf32>
    %1 = arith.truncf %0 : vector<512x32xf32> to vector<512x32xbf16>
    %c0_1 = arith.constant 0 : index
    %c0_2 = arith.constant 0 : index
    %2 = vector.load %arg2[%c0_1, %c0_2] : memref<32x128xbf16, #tpu.memory_space<vmem>>, vector<32x128xbf16>
    %cst = arith.constant dense<0.000000e+00> : vector<512x128xf32>
    %3 = tpu.matmul %1, %2, %cst {dimension_numbers = #tpu.dot_dimension_numbers<[1], [0], [0], [1], [0, 0, 1, 1], [], []>} : vector<512x32xbf16>, vector<32x128xbf16>, vector<512x128xf32> -> vector<512x128xf32>
    %c0_3 = arith.constant 0 : index
    %c0_4 = arith.constant 0 : index
    %4 = vector.load %arg3[%c0_3, %c0_4] : memref<1x128xf32, #tpu.memory_space<vmem>>, vector<1x128xf32>
    %5 = vector.broadcast %4 : vector<1x128xf32> to vector<512x128xf32>
    %6 = arith.addf %3, %5 : vector<512x128xf32>
    %cst_5 = arith.constant 0.000000e+00 : f32
    %7 = vector.broadcast %cst_5 : f32 to vector<512x128xf32>
    %8 = arith.maximumf %6, %7 : vector<512x128xf32>
    %9 = arith.truncf %8 : vector<512x128xf32> to vector<512x128xbf16>
    %c0_6 = arith.constant 0 : index
    %c0_7 = arith.constant 0 : index
    %10 = vector.load %arg4[%c0_6, %c0_7] : memref<128x128xbf16, #tpu.memory_space<vmem>>, vector<128x128xbf16>
    %cst_8 = arith.constant dense<0.000000e+00> : vector<512x128xf32>
    %11 = tpu.matmul %9, %10, %cst_8 {dimension_numbers = #tpu.dot_dimension_numbers<[1], [0], [0], [1], [0, 0, 1, 1], [], []>} : vector<512x128xbf16>, vector<128x128xbf16>, vector<512x128xf32> -> vector<512x128xf32>
    %c0_9 = arith.constant 0 : index
    %c0_10 = arith.constant 0 : index
    %12 = vector.load %arg5[%c0_9, %c0_10] : memref<1x128xf32, #tpu.memory_space<vmem>>, vector<1x128xf32>
    %13 = vector.broadcast %12 : vector<1x128xf32> to vector<512x128xf32>
    %14 = arith.addf %11, %13 : vector<512x128xf32>
    %15 = arith.truncf %14 : vector<512x128xf32> to vector<512x128xbf16>
    %c0_11 = arith.constant 0 : index
    %c0_12 = arith.constant 0 : index
    %16 = vector.load %arg6[%c0_11, %c0_12] : memref<512x128xbf16, #tpu.memory_space<vmem>>, vector<512x128xbf16>
    tpu.vector_store %arg6[%c0_11, %c0_12], %15 {strides = array<i32>} : memref<512x128xbf16, #tpu.memory_space<vmem>>, vector<512x128xbf16>,
    return
  }
  func.func @transform_0(%arg0: i32) -> (i32, i32) {
    %c0_i32 = arith.constant 0 : i32
    %c0_i32_0 = arith.constant 0 : i32
    return %arg0, %c0_i32 : i32, i32
  }
  func.func @transform_1(%arg0: i32) -> (i32, i32) {
    %c0_i32 = arith.constant 0 : i32
    %c0_i32_0 = arith.constant 0 : i32
    %c0_i32_1 = arith.constant 0 : i32
    return %c0_i32, %c0_i32_0 : i32, i32
  }
  func.func @transform_2(%arg0: i32) -> (i32, i32) {
    %c0_i32 = arith.constant 0 : i32
    %c0_i32_0 = arith.constant 0 : i32
    %c0_i32_1 = arith.constant 0 : i32
    return %c0_i32, %c0_i32_0 : i32, i32
  }
  func.func @transform_3(%arg0: i32) -> (i32, i32) {
    %c0_i32 = arith.constant 0 : i32
    %c0_i32_0 = arith.constant 0 : i32
    %c0_i32_1 = arith.constant 0 : i32
    return %c0_i32, %c0_i32_0 : i32, i32
  }
  func.func @transform_4(%arg0: i32) -> (i32, i32) {
    %c0_i32 = arith.constant 0 : i32
    %c0_i32_0 = arith.constant 0 : i32
    %c0_i32_1 = arith.constant 0 : i32
    return %c0_i32, %c0_i32_0 : i32, i32
  }
  func.func @transform_5(%arg0: i32) -> (i32, i32) {
    %c0_i32 = arith.constant 0 : i32
    %c0_i32_0 = arith.constant 0 : i32
    return %arg0, %c0_i32 : i32, i32
  }
}

</mosaic_0001>

<llo_original>
// kernel: sequential_mlp_forward.1
$region0: #{sequential_mlp_forward.1}
  #allocation0 [shape = 'u32[]', space=smem, size = 0x4, offset = 0x4, fixed_abs, tag = 'smem constant byte address 0x4 - core index']
  #allocation1 [shape = 'u32[72,128]{1,0:T(1,128)}', space=vmem, size = 0x9000, scoped, tag = 'internal scratch']
  %s0 = inlined_call_operand.vmem [shape: f32[1024,32], index: 0, kind: input, shape index: {}]
  %s1 = inlined_call_operand.vmem [shape: bf16[32,128], index: 1, kind: input, shape index: {}]
  %s2 = inlined_call_operand.vmem [shape: f32[1,128], index: 2, kind: input, shape index: {}]
  %s3 = inlined_call_operand.vmem [shape: bf16[128,128], index: 3, kind: input, shape index: {}]
  %s4 = inlined_call_operand.vmem [shape: f32[1,128], index: 4, kind: input, shape index: {}]
  %s5 = inlined_call_operand.vmem [shape: bf16[1024,128], index: 5, kind: output, shape index: {}]
  %s6 = sld [smem:[#allocation0]]
  $region53: #{sequential_mlp_forward.1} parent=0
    _
  %s8 = ssub.s32 1, %s6
  %s9 = scalar_select 0, %s8, %s6
  loop: start=0, step=1, limit=4
  $region2: #{sequential_mlp_forward.1} parent=0 // loop_pre_header
    _
  $region3: #{sequential_mlp_forward.1} parent=0 // loop_header
    %s11 = sphi 0, %s15
    %p12 = scmp.ge.s32.totalorder %s11, 4
    %s21 = sphi 0, %s23
    %s24 = sphi 0, %s21
    %s25 = sphi 0, %s24
    %s41 = sphi 0, %s25
    %s45 = sphi 0, %s45
    %s47 = sphi 0, %s45
    %s48 = sphi 0, %s47
    %s62 = sphi 0, %s48
    %s66 = sphi 0, %s66
    %s68 = sphi 0, %s66
    %s69 = sphi 0, %s68
    %s83 = sphi 0, %s69
    %s87 = sphi 0, %s87
    %s89 = sphi 0, %s87
    %s90 = sphi 0, %s89
    %s104 = sphi 0, %s90
    %s108 = sphi 0, %s108
    %s110 = sphi 0, %s108
    %s111 = sphi 0, %s110
    %s125 = sphi 0, %s111
    %s131 = sphi 0, %s133
    %s134 = sphi 0, %s131
    %s135 = sphi 0, %s134
    %s151 = sphi 0, %s135
  $region4: #{sequential_mlp_forward.1} parent=0 // loop_header_branch
    %14 = sbr.rel (%p12) target = $region8
  $region5: #{sequential_mlp_forward.1} parent=0 // loop_body
    %s16 = ssub.s32 %s11, 1
    %s17 = ssub.s32 %s11, 2
    %s18 = sadd.s32 %s11, 1
    %s19 = ssub.s32 %s11, %s18
    %p20 = scmp.eq.s32.totalorder %s19, 0
    %s22 = sadd.s32 %s21, 1
    %s23 = scalar_select %p20, %s21, %s22
    %p26 = pneg %p20
    %p27 = scmp.eq.s32.totalorder %s11, 1
    %p28 = por %p26, %p27
    %p29 = scmp.ne.s32.totalorder %s21, %s24
    %p30 = scmp.eq.s32.totalorder %s11, 0
    %p31 = por %p29, %p30
    %p32 = scmp.ne.s32.totalorder %s21, %s24
    %p33 = scmp.eq.s32.totalorder %s16, 1
    %p34 = por %p32, %p33
    %p35 = scmp.ne.s32.totalorder %s24, %s25
    %p36 = scmp.eq.s32.totalorder %s16, 0
    %p37 = por %p35, %p36
    %p38 = scmp.ne.s32.totalorder %s24, %s25
    %p39 = scmp.eq.s32.totalorder %s17, 1
    %p40 = por %p38, %p39
    %p42 = scmp.ne.s32.totalorder %s25, %s41
    %p43 = scmp.eq.s32.totalorder %s17, 0
    %p44 = por %p42, %p43
    %s46 = sadd.s32 %s45, 1
    %p49 = scmp.eq.s32.totalorder %s11, 1
    %p50 = scmp.ne.s32.totalorder %s45, %s47
    %p51 = scmp.eq.s32.totalorder %s11, 0
    %p52 = por %p50, %p51
    %p53 = scmp.ne.s32.totalorder %s45, %s47
    %p54 = scmp.eq.s32.totalorder %s16, 1
    %p55 = por %p53, %p54
    %p56 = scmp.ne.s32.totalorder %s47, %s48
    %p57 = scmp.eq.s32.totalorder %s16, 0
    %p58 = por %p56, %p57
    %p59 = scmp.ne.s32.totalorder %s47, %s48
    %p60 = scmp.eq.s32.totalorder %s17, 1
    %p61 = por %p59, %p60
    %p63 = scmp.ne.s32.totalorder %s48, %s62
    %p64 = scmp.eq.s32.totalorder %s17, 0
    %p65 = por %p63, %p64
    %s67 = sadd.s32 %s66, 1
    %p70 = scmp.eq.s32.totalorder %s11, 1
    %p71 = scmp.ne.s32.totalorder %s66, %s68
    %p72 = scmp.eq.s32.totalorder %s11, 0
    %p73 = por %p71, %p72
    %p74 = scmp.ne.s32.totalorder %s66, %s68
    %p75 = scmp.eq.s32.totalorder %s16, 1
    %p76 = por %p74, %p75
    %p77 = scmp.ne.s32.totalorder %s68, %s69
    %p78 = scmp.eq.s32.totalorder %s16, 0
    %p79 = por %p77, %p78
    %p80 = scmp.ne.s32.totalorder %s68, %s69
    %p81 = scmp.eq.s32.totalorder %s17, 1
    %p82 = por %p80, %p81
    %p84 = scmp.ne.s32.totalorder %s69, %s83
    %p85 = scmp.eq.s32.totalorder %s17, 0
    %p86 = por %p84, %p85
    %s88 = sadd.s32 %s87, 1
    %p91 = scmp.eq.s32.totalorder %s11, 1
    %p92 = scmp.ne.s32.totalorder %s87, %s89
    %p93 = scmp.eq.s32.totalorder %s11, 0
    %p94 = por %p92, %p93
    %p95 = scmp.ne.s32.totalorder %s87, %s89
    %p96 = scmp.eq.s32.totalorder %s16, 1
    %p97 = por %p95, %p96
    %p98 = scmp.ne.s32.totalorder %s89, %s90
    %p99 = scmp.eq.s32.totalorder %s16, 0
    %p100 = por %p98, %p99
    %p101 = scmp.ne.s32.totalorder %s89, %s90
    %p102 = scmp.eq.s32.totalorder %s17, 1
    %p103 = por %p101, %p102
    %p105 = scmp.ne.s32.totalorder %s90, %s104
    %p106 = scmp.eq.s32.totalorder %s17, 0
    %p107 = por %p105, %p106
    %s109 = sadd.s32 %s108, 1
    %p112 = scmp.eq.s32.totalorder %s11, 1
    %p113 = scmp.ne.s32.totalorder %s108, %s110
    %p114 = scmp.eq.s32.totalorder %s11, 0
    %p115 = por %p113, %p114
    %p116 = scmp.ne.s32.totalorder %s108, %s110
    %p117 = scmp.eq.s32.totalorder %s16, 1
    %p118 = por %p116, %p117
    %p119 = scmp.ne.s32.totalorder %s110, %s111
    %p120 = scmp.eq.s32.totalorder %s16, 0
    %p121 = por %p119, %p120
    %p122 = scmp.ne.s32.totalorder %s110, %s111
    %p123 = scmp.eq.s32.totalorder %s17, 1
    %p124 = por %p122, %p123
    %p126 = scmp.ne.s32.totalorder %s111, %s125
    %p127 = scmp.eq.s32.totalorder %s17, 0
    %p128 = por %p126, %p127
    %s129 = ssub.s32 %s11, %s18
    %p130 = scmp.eq.s32.totalorder %s129, 0
    %s132 = sadd.s32 %s131, 1
    %s133 = scalar_select %p130, %s131, %s132
    %p136 = pneg %p130
    %p137 = scmp.eq.s32.totalorder %s11, 1
    %p138 = por %p136, %p137
    %p139 = scmp.ne.s32.totalorder %s131, %s134
    %p140 = scmp.eq.s32.totalorder %s11, 0
    %p141 = por %p139, %p140
    %p142 = scmp.ne.s32.totalorder %s131, %s134
    %p143 = scmp.eq.s32.totalorder %s16, 1
    %p144 = por %p142, %p143
    %p145 = scmp.ne.s32.totalorder %s134, %s135
    %p146 = scmp.eq.s32.totalorder %s16, 0
    %p147 = por %p145, %p146
    %p148 = scmp.ne.s32.totalorder %s134, %s135
    %p149 = scmp.eq.s32.totalorder %s17, 1
    %p150 = por %p148, %p149
    %p152 = scmp.ne.s32.totalorder %s135, %s151
    %p153 = scmp.eq.s32.totalorder %s17, 0
    %p154 = por %p152, %p153
    %p155 = scmp.le.s32.totalorder 1, %s11
    %p156 = scmp.lt.s32.totalorder %s11, 3
    %p157 = pnand %p155, %p156
    %p158 = pneg %p157
    // Predicated region
    $region9: #{sequential_mlp_forward.1} parent=5 // pred_check
      _
    $region10: #{sequential_mlp_forward.1} parent=5 // pred_check_branch
      %160 = sbr.rel (%p157) target = $region12
    $region11: #{sequential_mlp_forward.1} parent=5 // pred_region
      %s161 = ssub.s32 %s11, 1
      // Predicated region
      $region13: #{sequential_mlp_forward.1} parent=11 // pred_check
        %p162 = pneg %p58
      $region14: #{sequential_mlp_forward.1} parent=11 // pred_check_branch
        %164 = sbr.rel (%p162) target = $region16
      $region15: #{sequential_mlp_forward.1} parent=11 // pred_region
        _
      $region16: #{sequential_mlp_forward.1} parent=11 // pred_fallthru
        _
      // Predicated region
      $region17: #{sequential_mlp_forward.1} parent=11 // pred_check
        %p165 = pneg %p79
      $region18: #{sequential_mlp_forward.1} parent=11 // pred_check_branch
        %167 = sbr.rel (%p165) target = $region20
      $region19: #{sequential_mlp_forward.1} parent=11 // pred_region
        _
      $region20: #{sequential_mlp_forward.1} parent=11 // pred_fallthru
        _
      // Predicated region
      $region21: #{sequential_mlp_forward.1} parent=11 // pred_check
        %p168 = pneg %p100
      $region22: #{sequential_mlp_forward.1} parent=11 // pred_check_branch
        %170 = sbr.rel (%p168) target = $region24
      $region23: #{sequential_mlp_forward.1} parent=11 // pred_region
        _
      $region24: #{sequential_mlp_forward.1} parent=11 // pred_fallthru
        _
      // Predicated region
      $region25: #{sequential_mlp_forward.1} parent=11 // pred_check
        %p171 = pneg %p121
      $region26: #{sequential_mlp_forward.1} parent=11 // pred_check_branch
        %173 = sbr.rel (%p171) target = $region28
      $region27: #{sequential_mlp_forward.1} parent=11 // pred_region
        _
      $region28: #{sequential_mlp_forward.1} parent=11 // pred_fallthru
        _
    $region12: #{sequential_mlp_forward.1} parent=5 // pred_fallthru
      _
    %p174 = scmp.lt.s32.totalorder %s11, 2
    // Predicated region
    $region29: #{sequential_mlp_forward.1} parent=5 // pred_check
      %p175 = pneg %p174
    $region30: #{sequential_mlp_forward.1} parent=5 // pred_check_branch
      %177 = sbr.rel (%p175) target = $region32
    $region31: #{sequential_mlp_forward.1} parent=5 // pred_region
      // Predicated region
      $region33: #{sequential_mlp_forward.1} parent=31 // pred_check
        %p178 = pneg %p31
      $region34: #{sequential_mlp_forward.1} parent=31 // pred_check_branch
        %180 = sbr.rel (%p178) target = $region36
      $region35: #{sequential_mlp_forward.1} parent=31 // pred_region
        %s181 = smul.u32 64, %s11
        %p182 = scmp.lt.s32.totalorder %s181, 127
        %s183 = scalar_select %p182, %s181, 127
        %s184 = smul.addr %s183, 8
        %s185 = scalar_lea.vmem %s0, %s184
        %s186 = smul.u32 64, %s11
      $region36: #{sequential_mlp_forward.1} parent=31 // pred_fallthru
        _
    $region32: #{sequential_mlp_forward.1} parent=5 // pred_fallthru
      _
    %p187 = scmp.le.s32.totalorder 1, %s11
    %p188 = scmp.lt.s32.totalorder %s11, 3
    %p189 = pnand %p187, %p188
    %p190 = pneg %p189
    // Predicated region
    $region37: #{sequential_mlp_forward.1} parent=5 // pred_check
      _
    $region38: #{sequential_mlp_forward.1} parent=5 // pred_check_branch
      %192 = sbr.rel (%p189) target = $region40
    $region39: #{sequential_mlp_forward.1} parent=5 // pred_region
      %s193 = ssub.s32 %s11, 1
      %s194 = smul.u32 64, %s16
      %p195 = scmp.lt.s32.totalorder %s194, 127
      %s196 = scalar_select %p195, %s194, 127
      %s197 = smul.addr %s196, 8
      %s198 = scalar_lea.vmem %s0, %s197
      %p199 = pneg %p37
      %p200 = pneg %p34
      %p201 = pneg %p58
      %p202 = pneg %p55
      %p203 = pneg %p79
      %p204 = pneg %p76
      %p205 = pneg %p100
      %p206 = pneg %p97
      %p207 = pneg %p121
      %p208 = pneg %p118
      %p209 = pneg %p147
      %p210 = pneg %p144
      %s211 = smul.u32 64, %s16
      %p212 = scmp.lt.s32.totalorder %s211, 127
      %s213 = scalar_select %p212, %s211, 127
      %s214 = smul.addr %s213, 4
      %s215 = scalar_lea.vmem %s5, %s214
      %s216 = smul.u32 64, %s16
      %p217 = scmp.lt.s32.totalorder %s216, 127
      %s218 = scalar_select %p217, %s216, 127
      %s219 = smul.addr %s218, 8
      %s220 = scalar_lea.vmem %s0, %s219
      %s221 = smul.u32 64, %s16
      %s222 = smul.u32 64, %s16
      %p223 = scmp.lt.s32.totalorder %s222, 127
      %s224 = scalar_select %p223, %s222, 127
      %s225 = smul.addr %s224, 4
      %s226 = scalar_lea.vmem %s5, %s225
      %s227 = smul.u32 64, %s16
      %v229 = vld [vmem:[%s220] sm:$0xff]
      %v230 = vld [vmem:[%s220 + $0x8] sm:$0xff]
      %v231 = vld [vmem:[%s220 + $0x10] sm:$0xff]
      %v232 = vld [vmem:[%s220 + $0x18] sm:$0xff]
      %v233 = vld [vmem:[%s220 + $0x20] sm:$0xff]
      %v234 = vld [vmem:[%s220 + $0x28] sm:$0xff]
      %v235 = vld [vmem:[%s220 + $0x30] sm:$0xff]
      %v236 = vld [vmem:[%s220 + $0x38] sm:$0xff]
      %v237 = vld [vmem:[%s220 + $0x40] sm:$0xff]
      %v238 = vld [vmem:[%s220 + $0x48] sm:$0xff]
      %v239 = vld [vmem:[%s220 + $0x50] sm:$0xff]
      %v240 = vld [vmem:[%s220 + $0x58] sm:$0xff]
      %v241 = vld [vmem:[%s220 + $0x60] sm:$0xff]
      %v242 = vld [vmem:[%s220 + $0x68] sm:$0xff]
      %v243 = vld [vmem:[%s220 + $0x70] sm:$0xff]
      %v244 = vld [vmem:[%s220 + $0x78] sm:$0xff]
      %v245 = vld [vmem:[%s220 + $0x80] sm:$0xff]
      %v246 = vld [vmem:[%s220 + $0x88] sm:$0xff]
      %v247 = vld [vmem:[%s220 + $0x90] sm:$0xff]
      %v248 = vld [vmem:[%s220 + $0x98] sm:$0xff]
      %v249 = vld [vmem:[%s220 + $0xa0] sm:$0xff]
      %v250 = vld [vmem:[%s220 + $0xa8] sm:$0xff]
      %v251 = vld [vmem:[%s220 + $0xb0] sm:$0xff]
      %v252 = vld [vmem:[%s220 + $0xb8] sm:$0xff]
      %v253 = vld [vmem:[%s220 + $0xc0] sm:$0xff]
      %v254 = vld [vmem:[%s220 + $0xc8] sm:$0xff]
      %v255 = vld [vmem:[%s220 + $0xd0] sm:$0xff]
      %v256 = vld [vmem:[%s220 + $0xd8] sm:$0xff]
      %v257 = vld [vmem:[%s220 + $0xe0] sm:$0xff]
      %v258 = vld [vmem:[%s220 + $0xe8] sm:$0xff]
      %v259 = vld [vmem:[%s220 + $0xf0] sm:$0xff]
      %v260 = vld [vmem:[%s220 + $0xf8] sm:$0xff]
      %v261 = vld [vmem:[%s220 + $0x100] sm:$0xff]
      %v262 = vld [vmem:[%s220 + $0x108] sm:$0xff]
      %v263 = vld [vmem:[%s220 + $0x110] sm:$0xff]
      %v264 = vld [vmem:[%s220 + $0x118] sm:$0xff]
      %v265 = vld [vmem:[%s220 + $0x120] sm:$0xff]
      %v266 = vld [vmem:[%s220 + $0x128] sm:$0xff]
      %v267 = vld [vmem:[%s220 + $0x130] sm:$0xff]
      %v268 = vld [vmem:[%s220 + $0x138] sm:$0xff]
      %v269 = vld [vmem:[%s220 + $0x140] sm:$0xff]
      %v270 = vld [vmem:[%s220 + $0x148] sm:$0xff]
      %v271 = vld [vmem:[%s220 + $0x150] sm:$0xff]
      %v272 = vld [vmem:[%s220 + $0x158] sm:$0xff]
      %v273 = vld [vmem:[%s220 + $0x160] sm:$0xff]
      %v274 = vld [vmem:[%s220 + $0x168] sm:$0xff]
      %v275 = vld [vmem:[%s220 + $0x170] sm:$0xff]
      %v276 = vld [vmem:[%s220 + $0x178] sm:$0xff]
      %v277 = vld [vmem:[%s220 + $0x180] sm:$0xff]
      %v278 = vld [vmem:[%s220 + $0x188] sm:$0xff]
      %v279 = vld [vmem:[%s220 + $0x190] sm:$0xff]
      %v280 = vld [vmem:[%s220 + $0x198] sm:$0xff]
      %v281 = vld [vmem:[%s220 + $0x1a0] sm:$0xff]
      %v282 = vld [vmem:[%s220 + $0x1a8] sm:$0xff]
      %v283 = vld [vmem:[%s220 + $0x1b0] sm:$0xff]
      %v284 = vld [vmem:[%s220 + $0x1b8] sm:$0xff]
      %v285 = vld [vmem:[%s220 + $0x1c0] sm:$0xff]
      %v286 = vld [vmem:[%s220 + $0x1c8] sm:$0xff]
      %v287 = vld [vmem:[%s220 + $0x1d0] sm:$0xff]
      %v288 = vld [vmem:[%s220 + $0x1d8] sm:$0xff]
      %v289 = vld [vmem:[%s220 + $0x1e0] sm:$0xff]
      %v290 = vld [vmem:[%s220 + $0x1e8] sm:$0xff]
      %v291 = vld [vmem:[%s220 + $0x1f0] sm:$0xff]
      %v292 = vld [vmem:[%s220 + $0x1f8] sm:$0xff]
      %v293 = vpack.c.bf16 %v230, %v229
      %v294 = vpack.c.bf16 %v232, %v231
      %v295 = vpack.c.bf16 %v234, %v233
      %v296 = vpack.c.bf16 %v236, %v235
      %v297 = vpack.c.bf16 %v238, %v237
      %v298 = vpack.c.bf16 %v240, %v239
      %v299 = vpack.c.bf16 %v242, %v241
      %v300 = vpack.c.bf16 %v244, %v243
      %v301 = vpack.c.bf16 %v246, %v245
      %v302 = vpack.c.bf16 %v248, %v247
      %v303 = vpack.c.bf16 %v250, %v249
      %v304 = vpack.c.bf16 %v252, %v251
      %v305 = vpack.c.bf16 %v254, %v253
      %v306 = vpack.c.bf16 %v256, %v255
      %v307 = vpack.c.bf16 %v258, %v257
      %v308 = vpack.c.bf16 %v260, %v259
      %v309 = vpack.c.bf16 %v262, %v261
      %v310 = vpack.c.bf16 %v264, %v263
      %v311 = vpack.c.bf16 %v266, %v265
      %v312 = vpack.c.bf16 %v268, %v267
      %v313 = vpack.c.bf16 %v270, %v269
      %v314 = vpack.c.bf16 %v272, %v271
      %v315 = vpack.c.bf16 %v274, %v273
      %v316 = vpack.c.bf16 %v276, %v275
      %v317 = vpack.c.bf16 %v278, %v277
      %v318 = vpack.c.bf16 %v280, %v279
      %v319 = vpack.c.bf16 %v282, %v281
      %v320 = vpack.c.bf16 %v284, %v283
      %v321 = vpack.c.bf16 %v286, %v285
      %v322 = vpack.c.bf16 %v288, %v287
      %v323 = vpack.c.bf16 %v290, %v289
      %v324 = vpack.c.bf16 %v292, %v291
      %v325 = vld [vmem:[%s1] sm:$0xf]
      %v326 = vld [vmem:[%s1 + $0x4] sm:$0xf]
      %v327 = vld [vmem:[%s1 + $0x8] sm:$0xf]
      %v328 = vld [vmem:[%s1 + $0xc] sm:$0xf]
      %v329 = vld [vmem:[%s2] sm:$0x1]
      %v331 = vperm.slane %v329, 0
      %v337 = vunpack.c.l.b16 %v325
      %v338 = vunpack.c.l.b16 %v326
      %v339 = vunpack.c.l.b16 %v327
      %v340 = vunpack.c.l.b16 %v328
      %v341 = vpack.c.b16 %v338, %v337
      %v342 = vpack.c.b16 %v340, %v339
      %vm345 = vcmask 261120
      %v347 = vsel %vm345, %v293, 0
      %v350 = vsel %vm345, %v294, 0
      %v353 = vsel %vm345, %v295, 0
      %v356 = vsel %vm345, %v296, 0
      %v359 = vsel %vm345, %v297, 0
      %v362 = vsel %vm345, %v298, 0
      %v365 = vsel %vm345, %v299, 0
      %v368 = vsel %vm345, %v300, 0
      %v371 = vsel %vm345, %v301, 0
      %v374 = vsel %vm345, %v302, 0
      %v377 = vsel %vm345, %v303, 0
      %v380 = vsel %vm345, %v304, 0
      %v383 = vsel %vm345, %v305, 0
      %v386 = vsel %vm345, %v306, 0
      %v389 = vsel %vm345, %v307, 0
      %v392 = vsel %vm345, %v308, 0
      %v395 = vsel %vm345, %v309, 0
      %v398 = vsel %vm345, %v310, 0
      %v401 = vsel %vm345, %v311, 0
      %v404 = vsel %vm345, %v312, 0
      %v407 = vsel %vm345, %v313, 0
      %v410 = vsel %vm345, %v314, 0
      %v413 = vsel %vm345, %v315, 0
      %v416 = vsel %vm345, %v316, 0
      %v419 = vsel %vm345, %v317, 0
      %v422 = vsel %vm345, %v318, 0
      %v425 = vsel %vm345, %v319, 0
      %v428 = vsel %vm345, %v320, 0
      %v431 = vsel %vm345, %v321, 0
      %v434 = vsel %vm345, %v322, 0
      %v437 = vsel %vm345, %v323, 0
      %v440 = vsel %vm345, %v324, 0
      %442 = vmatpush.bf16.msra.mxu0 0
      %443 = vmatpush.bf16.msra.mxu0 0
      %444 = vmatpush.bf16.msra.mxu0 0
      %445 = vmatpush.bf16.msra.mxu0 0
      %446 = vmatpush.bf16.msra.mxu0 0
      %447 = vmatpush.bf16.msra.mxu0 0
      %448 = vmatpush.bf16.msra.mxu0 %v342
      %449 = vmatpush.bf16.msra.mxu0 %v341
      %450 = vmatmul.bf16.gmra.mxu0 %v347
      %v451 = vpop.f32.mrf.mxu0
      %v452 = vadd.f32 %v331, %v451
      %v453 = vpop.f32.mrf.mxu0
      %v454 = vadd.f32 %v331, %v453
      %455 = vmatmul.bf16.gmra.mxu0 %v350
      %v456 = vpop.f32.mrf.mxu0
      %v457 = vadd.f32 %v331, %v456
      %v458 = vpop.f32.mrf.mxu0
      %v459 = vadd.f32 %v331, %v458
      %460 = vmatmul.bf16.gmra.mxu0 %v353
      %v461 = vpop.f32.mrf.mxu0
      %v462 = vadd.f32 %v331, %v461
      %v463 = vpop.f32.mrf.mxu0
      %v464 = vadd.f32 %v331, %v463
      %465 = vmatmul.bf16.gmra.mxu0 %v356
      %v466 = vpop.f32.mrf.mxu0
      %v467 = vadd.f32 %v331, %v466
      %v468 = vpop.f32.mrf.mxu0
      %v469 = vadd.f32 %v331, %v468
      %470 = vmatmul.bf16.gmra.mxu0 %v359
      %v471 = vpop.f32.mrf.mxu0
      %v472 = vadd.f32 %v331, %v471
      %v473 = vpop.f32.mrf.mxu0
      %v474 = vadd.f32 %v331, %v473
      %475 = vmatmul.bf16.gmra.mxu0 %v362
      %v476 = vpop.f32.mrf.mxu0
      %v477 = vadd.f32 %v331, %v476
      %v478 = vpop.f32.mrf.mxu0
      %v479 = vadd.f32 %v331, %v478
      %480 = vmatmul.bf16.gmra.mxu0 %v365
      %v481 = vpop.f32.mrf.mxu0
      %v482 = vadd.f32 %v331, %v481
      %v483 = vpop.f32.mrf.mxu0
      %v484 = vadd.f32 %v331, %v483
      %485 = vmatmul.bf16.gmra.mxu0 %v368
      %v486 = vpop.f32.mrf.mxu0
      %v487 = vadd.f32 %v331, %v486
      %v488 = vpop.f32.mrf.mxu0
      %v489 = vadd.f32 %v331, %v488
      %490 = vmatmul.bf16.gmra.mxu0 %v371
      %v491 = vpop.f32.mrf.mxu0
      %v492 = vadd.f32 %v331, %v491
      %v493 = vpop.f32.mrf.mxu0
      %v494 = vadd.f32 %v331, %v493
      %495 = vmatmul.bf16.gmra.mxu0 %v374
      %v496 = vpop.f32.mrf.mxu0
      %v497 = vadd.f32 %v331, %v496
      %v498 = vpop.f32.mrf.mxu0
      %v499 = vadd.f32 %v331, %v498
      %500 = vmatmul.bf16.gmra.mxu0 %v377
      %v501 = vpop.f32.mrf.mxu0
      %v502 = vadd.f32 %v331, %v501
      %v503 = vpop.f32.mrf.mxu0
      %v504 = vadd.f32 %v331, %v503
      %505 = vmatmul.bf16.gmra.mxu0 %v380
      %v506 = vpop.f32.mrf.mxu0
      %v507 = vadd.f32 %v331, %v506
      %v508 = vpop.f32.mrf.mxu0
      %v509 = vadd.f32 %v331, %v508
      %510 = vmatmul.bf16.gmra.mxu0 %v383
      %v511 = vpop.f32.mrf.mxu0
      %v512 = vadd.f32 %v331, %v511
      %v513 = vpop.f32.mrf.mxu0
      %v514 = vadd.f32 %v331, %v513
      %515 = vmatmul.bf16.gmra.mxu0 %v386
      %v516 = vpop.f32.mrf.mxu0
      %v517 = vadd.f32 %v331, %v516
      %v518 = vpop.f32.mrf.mxu0
      %v519 = vadd.f32 %v331, %v518
      %520 = vmatmul.bf16.gmra.mxu0 %v389
      %v521 = vpop.f32.mrf.mxu0
      %v522 = vadd.f32 %v331, %v521
      %v523 = vpop.f32.mrf.mxu0
      %v524 = vadd.f32 %v331, %v523
      %525 = vmatmul.bf16.gmra.mxu0 %v392
      %v526 = vpop.f32.mrf.mxu0
      %v527 = vadd.f32 %v331, %v526
      %v528 = vpop.f32.mrf.mxu0
      %v529 = vadd.f32 %v331, %v528
      %530 = vmatmul.bf16.gmra.mxu0 %v395
      %v531 = vpop.f32.mrf.mxu0
      %v532 = vadd.f32 %v331, %v531
      %v533 = vpop.f32.mrf.mxu0
      %v534 = vadd.f32 %v331, %v533
      %535 = vmatmul.bf16.gmra.mxu0 %v398
      %v536 = vpop.f32.mrf.mxu0
      %v537 = vadd.f32 %v331, %v536
      %v538 = vpop.f32.mrf.mxu0
      %v539 = vadd.f32 %v331, %v538
      %540 = vmatmul.bf16.gmra.mxu0 %v401
      %v541 = vpop.f32.mrf.mxu0
      %v542 = vadd.f32 %v331, %v541
      %v543 = vpop.f32.mrf.mxu0
      %v544 = vadd.f32 %v331, %v543
      %545 = vmatmul.bf16.gmra.mxu0 %v404
      %v546 = vpop.f32.mrf.mxu0
      %v547 = vadd.f32 %v331, %v546
      %v548 = vpop.f32.mrf.mxu0
      %v549 = vadd.f32 %v331, %v548
      %550 = vmatmul.bf16.gmra.mxu0 %v407
      %v551 = vpop.f32.mrf.mxu0
      %v552 = vadd.f32 %v331, %v551
      %v553 = vpop.f32.mrf.mxu0
      %v554 = vadd.f32 %v331, %v553
      %555 = vmatmul.bf16.gmra.mxu0 %v410
      %v556 = vpop.f32.mrf.mxu0
      %v557 = vadd.f32 %v331, %v556
      %v558 = vpop.f32.mrf.mxu0
      %v559 = vadd.f32 %v331, %v558
      %560 = vmatmul.bf16.gmra.mxu0 %v413
      %v561 = vpop.f32.mrf.mxu0
      %v562 = vadd.f32 %v331, %v561
      %v563 = vpop.f32.mrf.mxu0
      %v564 = vadd.f32 %v331, %v563
      %565 = vmatmul.bf16.gmra.mxu0 %v416
      %v566 = vpop.f32.mrf.mxu0
      %v567 = vadd.f32 %v331, %v566
      %v568 = vpop.f32.mrf.mxu0
      %v569 = vadd.f32 %v331, %v568
      %570 = vmatmul.bf16.gmra.mxu0 %v419
      %v571 = vpop.f32.mrf.mxu0
      %v572 = vadd.f32 %v331, %v571
      %v573 = vpop.f32.mrf.mxu0
      %v574 = vadd.f32 %v331, %v573
      %575 = vmatmul.bf16.gmra.mxu0 %v422
      %v576 = vpop.f32.mrf.mxu0
      %v577 = vadd.f32 %v331, %v576
      %v578 = vpop.f32.mrf.mxu0
      %v579 = vadd.f32 %v331, %v578
      %580 = vmatmul.bf16.gmra.mxu0 %v425
      %v581 = vpop.f32.mrf.mxu0
      %v582 = vadd.f32 %v331, %v581
      %v583 = vpop.f32.mrf.mxu0
      %v584 = vadd.f32 %v331, %v583
      %585 = vmatmul.bf16.gmra.mxu0 %v428
      %v586 = vpop.f32.mrf.mxu0
      %v587 = vadd.f32 %v331, %v586
      %v588 = vpop.f32.mrf.mxu0
      %v589 = vadd.f32 %v331, %v588
      %590 = vmatmul.bf16.gmra.mxu0 %v431
      %v591 = vpop.f32.mrf.mxu0
      %v592 = vadd.f32 %v331, %v591
      %v593 = vpop.f32.mrf.mxu0
      %v594 = vadd.f32 %v331, %v593
      %595 = vmatmul.bf16.gmra.mxu0 %v434
      %v596 = vpop.f32.mrf.mxu0
      %v597 = vadd.f32 %v331, %v596
      %v598 = vpop.f32.mrf.mxu0
      %v599 = vadd.f32 %v331, %v598
      %600 = vmatmul.bf16.gmra.mxu0 %v437
      %v601 = vpop.f32.mrf.mxu0
      %v602 = vadd.f32 %v331, %v601
      %v603 = vpop.f32.mrf.mxu0
      %v604 = vadd.f32 %v331, %v603
      %605 = vmatmul.bf16.gmra.mxu0 %v440
      %v606 = vpop.f32.mrf.mxu0
      %v607 = vadd.f32 %v331, %v606
      %v608 = vpop.f32.mrf.mxu0
      %v609 = vadd.f32 %v331, %v608
      %610 = vdwg.mxu0
      %v611 = vmax.f32 %v452, 0.0
      %v612 = vmax.f32 %v454, 0.0
      %v613 = vmax.f32 %v457, 0.0
      %v614 = vmax.f32 %v459, 0.0
      %v615 = vmax.f32 %v462, 0.0
      %v616 = vmax.f32 %v464, 0.0
      %v617 = vmax.f32 %v467, 0.0
      %v618 = vmax.f32 %v469, 0.0
      %v619 = vmax.f32 %v472, 0.0
      %v620 = vmax.f32 %v474, 0.0
      %v621 = vmax.f32 %v477, 0.0
      %v622 = vmax.f32 %v479, 0.0
      %v623 = vmax.f32 %v482, 0.0
      %v624 = vmax.f32 %v484, 0.0
      %v625 = vmax.f32 %v487, 0.0
      %v626 = vmax.f32 %v489, 0.0
      %v627 = vmax.f32 %v492, 0.0
      %v628 = vmax.f32 %v494, 0.0
      %v629 = vmax.f32 %v497, 0.0
      %v630 = vmax.f32 %v499, 0.0
      %v631 = vmax.f32 %v502, 0.0
      %v632 = vmax.f32 %v504, 0.0
      %v633 = vmax.f32 %v507, 0.0
      %v634 = vmax.f32 %v509, 0.0
      %v635 = vmax.f32 %v512, 0.0
      %v636 = vmax.f32 %v514, 0.0
      %v637 = vmax.f32 %v517, 0.0
      %v638 = vmax.f32 %v519, 0.0
      %v639 = vmax.f32 %v522, 0.0
      %v640 = vmax.f32 %v524, 0.0
      %v641 = vmax.f32 %v527, 0.0
      %v642 = vmax.f32 %v529, 0.0
      %v643 = vmax.f32 %v532, 0.0
      %v644 = vmax.f32 %v534, 0.0
      %v645 = vmax.f32 %v537, 0.0
      %v646 = vmax.f32 %v539, 0.0
      %v647 = vmax.f32 %v542, 0.0
      %v648 = vmax.f32 %v544, 0.0
      %v649 = vmax.f32 %v547, 0.0
      %v650 = vmax.f32 %v549, 0.0
      %v651 = vmax.f32 %v552, 0.0
      %v652 = vmax.f32 %v554, 0.0
      %v653 = vmax.f32 %v557, 0.0
      %v654 = vmax.f32 %v559, 0.0
      %v655 = vmax.f32 %v562, 0.0
      %v656 = vmax.f32 %v564, 0.0
      %v657 = vmax.f32 %v567, 0.0
      %v658 = vmax.f32 %v569, 0.0
      %v659 = vmax.f32 %v572, 0.0
      %v660 = vmax.f32 %v574, 0.0
      %v661 = vmax.f32 %v577, 0.0
      %v662 = vmax.f32 %v579, 0.0
      %v663 = vmax.f32 %v582, 0.0
      %v664 = vmax.f32 %v584, 0.0
      %v665 = vmax.f32 %v587, 0.0
      %v666 = vmax.f32 %v589, 0.0
      %v667 = vmax.f32 %v592, 0.0
      %v668 = vmax.f32 %v594, 0.0
      %v669 = vmax.f32 %v597, 0.0
      %v670 = vmax.f32 %v599, 0.0
      %v671 = vmax.f32 %v602, 0.0
      %v672 = vmax.f32 %v604, 0.0
      %v673 = vmax.f32 %v607, 0.0
      %v674 = vmax.f32 %v609, 0.0
      %v675 = vpack.c.bf16 %v612, %v611
      %v676 = vpack.c.bf16 %v614, %v613
      %v677 = vpack.c.bf16 %v616, %v615
      %v678 = vpack.c.bf16 %v618, %v617
      %v679 = vpack.c.bf16 %v620, %v619
      %v680 = vpack.c.bf16 %v622, %v621
      %v681 = vpack.c.bf16 %v624, %v623
      %v682 = vpack.c.bf16 %v626, %v625
      %v683 = vpack.c.bf16 %v628, %v627
      %v684 = vpack.c.bf16 %v630, %v629
      %v685 = vpack.c.bf16 %v632, %v631
      %v686 = vpack.c.bf16 %v634, %v633
      %v687 = vpack.c.bf16 %v636, %v635
      %v688 = vpack.c.bf16 %v638, %v637
      %v689 = vpack.c.bf16 %v640, %v639
      %v690 = vpack.c.bf16 %v642, %v641
      %v691 = vpack.c.bf16 %v644, %v643
      %v692 = vpack.c.bf16 %v646, %v645
      %v693 = vpack.c.bf16 %v648, %v647
      %v694 = vpack.c.bf16 %v650, %v649
      %v695 = vpack.c.bf16 %v652, %v651
      %v696 = vpack.c.bf16 %v654, %v653
      %v697 = vpack.c.bf16 %v656, %v655
      %v698 = vpack.c.bf16 %v658, %v657
      %v699 = vpack.c.bf16 %v660, %v659
      %v700 = vpack.c.bf16 %v662, %v661
      %v701 = vpack.c.bf16 %v664, %v663
      %v702 = vpack.c.bf16 %v666, %v665
      %v703 = vpack.c.bf16 %v668, %v667
      %v704 = vpack.c.bf16 %v670, %v669
      %v705 = vpack.c.bf16 %v672, %v671
      %v706 = vpack.c.bf16 %v674, %v673
      %v707 = vld [vmem:[%s3] sm:$0xf]
      %v708 = vld [vmem:[%s3 + $0x4] sm:$0xf]
      %v709 = vld [vmem:[%s3 + $0x8] sm:$0xf]
      %v710 = vld [vmem:[%s3 + $0xc] sm:$0xf]
      %v711 = vld [vmem:[%s3 + $0x10] sm:$0xf]
      %v712 = vld [vmem:[%s3 + $0x14] sm:$0xf]
      %v713 = vld [vmem:[%s3 + $0x18] sm:$0xf]
      %v714 = vld [vmem:[%s3 + $0x1c] sm:$0xf]
      %v715 = vld [vmem:[%s3 + $0x20] sm:$0xf]
      %v716 = vld [vmem:[%s3 + $0x24] sm:$0xf]
      %v717 = vld [vmem:[%s3 + $0x28] sm:$0xf]
      %v718 = vld [vmem:[%s3 + $0x2c] sm:$0xf]
      %v719 = vld [vmem:[%s3 + $0x30] sm:$0xf]
      %v720 = vld [vmem:[%s3 + $0x34] sm:$0xf]
      %v721 = vld [vmem:[%s3 + $0x38] sm:$0xf]
      %v722 = vld [vmem:[%s3 + $0x3c] sm:$0xf]
      %v723 = vld [vmem:[%s4] sm:$0x1]
      %v725 = vperm.slane %v723, 0
      %v743 = vunpack.c.l.b16 %v707
      %v744 = vunpack.c.l.b16 %v708
      %v745 = vunpack.c.l.b16 %v709
      %v746 = vunpack.c.l.b16 %v710
      %v747 = vunpack.c.l.b16 %v711
      %v748 = vunpack.c.l.b16 %v712
      %v749 = vunpack.c.l.b16 %v713
      %v750 = vunpack.c.l.b16 %v714
      %v751 = vunpack.c.l.b16 %v715
      %v752 = vunpack.c.l.b16 %v716
      %v753 = vunpack.c.l.b16 %v717
      %v754 = vunpack.c.l.b16 %v718
      %v755 = vunpack.c.l.b16 %v719
      %v756 = vunpack.c.l.b16 %v720
      %v757 = vunpack.c.l.b16 %v721
      %v758 = vunpack.c.l.b16 %v722
      %v759 = vpack.c.b16 %v744, %v743
      %v760 = vpack.c.b16 %v746, %v745
      %v761 = vpack.c.b16 %v748, %v747
      %v762 = vpack.c.b16 %v750, %v749
      %v763 = vpack.c.b16 %v752, %v751
      %v764 = vpack.c.b16 %v754, %v753
      %v765 = vpack.c.b16 %v756, %v755
      %v766 = vpack.c.b16 %v758, %v757
      %775 = vmatpush.bf16.msra.mxu0 %v766
      %776 = vmatpush.bf16.msra.mxu0 %v765
      %777 = vmatpush.bf16.msra.mxu0 %v764
      %778 = vmatpush.bf16.msra.mxu0 %v763
      %779 = vmatpush.bf16.msra.mxu0 %v762
      %780 = vmatpush.bf16.msra.mxu0 %v761
      %781 = vmatpush.bf16.msra.mxu0 %v760
      %782 = vmatpush.bf16.msra.mxu0 %v759
      %783 = vmatmul.bf16.gmra.mxu0 %v675
      %v784 = vpop.f32.mrf.mxu0
      %v785 = vadd.f32 %v725, %v784
      %v786 = vpop.f32.mrf.mxu0
      %v787 = vadd.f32 %v725, %v786
      %788 = vmatmul.bf16.gmra.mxu0 %v676
      %v789 = vpop.f32.mrf.mxu0
      %v790 = vadd.f32 %v725, %v789
      %v791 = vpop.f32.mrf.mxu0
      %v792 = vadd.f32 %v725, %v791
      %793 = vmatmul.bf16.gmra.mxu0 %v677
      %v794 = vpop.f32.mrf.mxu0
      %v795 = vadd.f32 %v725, %v794
      %v796 = vpop.f32.mrf.mxu0
      %v797 = vadd.f32 %v725, %v796
      %798 = vmatmul.bf16.gmra.mxu0 %v678
      %v799 = vpop.f32.mrf.mxu0
      %v800 = vadd.f32 %v725, %v799
      %v801 = vpop.f32.mrf.mxu0
      %v802 = vadd.f32 %v725, %v801
      %803 = vmatmul.bf16.gmra.mxu0 %v679
      %v804 = vpop.f32.mrf.mxu0
      %v805 = vadd.f32 %v725, %v804
      %v806 = vpop.f32.mrf.mxu0
      %v807 = vadd.f32 %v725, %v806
      %808 = vmatmul.bf16.gmra.mxu0 %v680
      %v809 = vpop.f32.mrf.mxu0
      %v810 = vadd.f32 %v725, %v809
      %v811 = vpop.f32.mrf.mxu0
      %v812 = vadd.f32 %v725, %v811
      %813 = vmatmul.bf16.gmra.mxu0 %v681
      %v814 = vpop.f32.mrf.mxu0
      %v815 = vadd.f32 %v725, %v814
      %v816 = vpop.f32.mrf.mxu0
      %v817 = vadd.f32 %v725, %v816
      %818 = vmatmul.bf16.gmra.mxu0 %v682
      %v819 = vpop.f32.mrf.mxu0
      %v820 = vadd.f32 %v725, %v819
      %v821 = vpop.f32.mrf.mxu0
      %v822 = vadd.f32 %v725, %v821
      %823 = vmatmul.bf16.gmra.mxu0 %v683
      %v824 = vpop.f32.mrf.mxu0
      %v825 = vadd.f32 %v725, %v824
      %v826 = vpop.f32.mrf.mxu0
      %v827 = vadd.f32 %v725, %v826
      %828 = vmatmul.bf16.gmra.mxu0 %v684
      %v829 = vpop.f32.mrf.mxu0
      %v830 = vadd.f32 %v725, %v829
      %v831 = vpop.f32.mrf.mxu0
      %v832 = vadd.f32 %v725, %v831
      %833 = vmatmul.bf16.gmra.mxu0 %v685
      %v834 = vpop.f32.mrf.mxu0
      %v835 = vadd.f32 %v725, %v834
      %v836 = vpop.f32.mrf.mxu0
      %v837 = vadd.f32 %v725, %v836
      %838 = vmatmul.bf16.gmra.mxu0 %v686
      %v839 = vpop.f32.mrf.mxu0
      %v840 = vadd.f32 %v725, %v839
      %v841 = vpop.f32.mrf.mxu0
      %v842 = vadd.f32 %v725, %v841
      %843 = vmatmul.bf16.gmra.mxu0 %v687
      %v844 = vpop.f32.mrf.mxu0
      %v845 = vadd.f32 %v725, %v844
      %v846 = vpop.f32.mrf.mxu0
      %v847 = vadd.f32 %v725, %v846
      %848 = vmatmul.bf16.gmra.mxu0 %v688
      %v849 = vpop.f32.mrf.mxu0
      %v850 = vadd.f32 %v725, %v849
      %v851 = vpop.f32.mrf.mxu0
      %v852 = vadd.f32 %v725, %v851
      %853 = vmatmul.bf16.gmra.mxu0 %v689
      %v854 = vpop.f32.mrf.mxu0
      %v855 = vadd.f32 %v725, %v854
      %v856 = vpop.f32.mrf.mxu0
      %v857 = vadd.f32 %v725, %v856
      %858 = vmatmul.bf16.gmra.mxu0 %v690
      %v859 = vpop.f32.mrf.mxu0
      %v860 = vadd.f32 %v725, %v859
      %v861 = vpop.f32.mrf.mxu0
      %v862 = vadd.f32 %v725, %v861
      %863 = vmatmul.bf16.gmra.mxu0 %v691
      %v864 = vpop.f32.mrf.mxu0
      %v865 = vadd.f32 %v725, %v864
      %v866 = vpop.f32.mrf.mxu0
      %v867 = vadd.f32 %v725, %v866
      %868 = vmatmul.bf16.gmra.mxu0 %v692
      %v869 = vpop.f32.mrf.mxu0
      %v870 = vadd.f32 %v725, %v869
      %v871 = vpop.f32.mrf.mxu0
      %v872 = vadd.f32 %v725, %v871
      %873 = vmatmul.bf16.gmra.mxu0 %v693
      %v874 = vpop.f32.mrf.mxu0
      %v875 = vadd.f32 %v725, %v874
      %v876 = vpop.f32.mrf.mxu0
      %v877 = vadd.f32 %v725, %v876
      %878 = vmatmul.bf16.gmra.mxu0 %v694
      %v879 = vpop.f32.mrf.mxu0
      %v880 = vadd.f32 %v725, %v879
      %v881 = vpop.f32.mrf.mxu0
      %v882 = vadd.f32 %v725, %v881
      %883 = vmatmul.bf16.gmra.mxu0 %v695
      %v884 = vpop.f32.mrf.mxu0
      %v885 = vadd.f32 %v725, %v884
      %v886 = vpop.f32.mrf.mxu0
      %v887 = vadd.f32 %v725, %v886
      %888 = vmatmul.bf16.gmra.mxu0 %v696
      %v889 = vpop.f32.mrf.mxu0
      %v890 = vadd.f32 %v725, %v889
      %v891 = vpop.f32.mrf.mxu0
      %v892 = vadd.f32 %v725, %v891
      %893 = vmatmul.bf16.gmra.mxu0 %v697
      %v894 = vpop.f32.mrf.mxu0
      %v895 = vadd.f32 %v725, %v894
      %v896 = vpop.f32.mrf.mxu0
      %v897 = vadd.f32 %v725, %v896
      %898 = vmatmul.bf16.gmra.mxu0 %v698
      %v899 = vpop.f32.mrf.mxu0
      %v900 = vadd.f32 %v725, %v899
      %v901 = vpop.f32.mrf.mxu0
      %v902 = vadd.f32 %v725, %v901
      %903 = vmatmul.bf16.gmra.mxu0 %v699
      %v904 = vpop.f32.mrf.mxu0
      %v905 = vadd.f32 %v725, %v904
      %v906 = vpop.f32.mrf.mxu0
      %v907 = vadd.f32 %v725, %v906
      %908 = vmatmul.bf16.gmra.mxu0 %v700
      %v909 = vpop.f32.mrf.mxu0
      %v910 = vadd.f32 %v725, %v909
      %v911 = vpop.f32.mrf.mxu0
      %v912 = vadd.f32 %v725, %v911
      %913 = vmatmul.bf16.gmra.mxu0 %v701
      %v914 = vpop.f32.mrf.mxu0
      %v915 = vadd.f32 %v725, %v914
      %v916 = vpop.f32.mrf.mxu0
      %v917 = vadd.f32 %v725, %v916
      %918 = vmatmul.bf16.gmra.mxu0 %v702
      %v919 = vpop.f32.mrf.mxu0
      %v920 = vadd.f32 %v725, %v919
      %v921 = vpop.f32.mrf.mxu0
      %v922 = vadd.f32 %v725, %v921
      %923 = vmatmul.bf16.gmra.mxu0 %v703
      %v924 = vpop.f32.mrf.mxu0
      %v925 = vadd.f32 %v725, %v924
      %v926 = vpop.f32.mrf.mxu0
      %v927 = vadd.f32 %v725, %v926
      %928 = vmatmul.bf16.gmra.mxu0 %v704
      %v929 = vpop.f32.mrf.mxu0
      %v930 = vadd.f32 %v725, %v929
      %v931 = vpop.f32.mrf.mxu0
      %v932 = vadd.f32 %v725, %v931
      %933 = vmatmul.bf16.gmra.mxu0 %v705
      %v934 = vpop.f32.mrf.mxu0
      %v935 = vadd.f32 %v725, %v934
      %v936 = vpop.f32.mrf.mxu0
      %v937 = vadd.f32 %v725, %v936
      %938 = vmatmul.bf16.gmra.mxu0 %v706
      %v939 = vpop.f32.mrf.mxu0
      %v940 = vadd.f32 %v725, %v939
      %v941 = vpop.f32.mrf.mxu0
      %v942 = vadd.f32 %v725, %v941
      %943 = vdwg.mxu0
      %v944 = vpack.c.bf16 %v785, %v785
      %v945 = vpack.c.bf16 %v787, %v787
      %v946 = vpack.c.bf16 %v790, %v790
      %v947 = vpack.c.bf16 %v792, %v792
      %v948 = vpack.c.bf16 %v795, %v795
      %v949 = vpack.c.bf16 %v797, %v797
      %v950 = vpack.c.bf16 %v800, %v800
      %v951 = vpack.c.bf16 %v802, %v802
      %v952 = vpack.c.bf16 %v805, %v805
      %v953 = vpack.c.bf16 %v807, %v807
      %v954 = vpack.c.bf16 %v810, %v810
      %v955 = vpack.c.bf16 %v812, %v812
      %v956 = vpack.c.bf16 %v815, %v815
      %v957 = vpack.c.bf16 %v817, %v817
      %v958 = vpack.c.bf16 %v820, %v820
      %v959 = vpack.c.bf16 %v822, %v822
      %v960 = vpack.c.bf16 %v825, %v825
      %v961 = vpack.c.bf16 %v827, %v827
      %v962 = vpack.c.bf16 %v830, %v830
      %v963 = vpack.c.bf16 %v832, %v832
      %v964 = vpack.c.bf16 %v835, %v835
      %v965 = vpack.c.bf16 %v837, %v837
      %v966 = vpack.c.bf16 %v840, %v840
      %v967 = vpack.c.bf16 %v842, %v842
      %v968 = vpack.c.bf16 %v845, %v845
      %v969 = vpack.c.bf16 %v847, %v847
      %v970 = vpack.c.bf16 %v850, %v850
      %v971 = vpack.c.bf16 %v852, %v852
      %v972 = vpack.c.bf16 %v855, %v855
      %v973 = vpack.c.bf16 %v857, %v857
      %v974 = vpack.c.bf16 %v860, %v860
      %v975 = vpack.c.bf16 %v862, %v862
      %v976 = vpack.c.bf16 %v865, %v865
      %v977 = vpack.c.bf16 %v867, %v867
      %v978 = vpack.c.bf16 %v870, %v870
      %v979 = vpack.c.bf16 %v872, %v872
      %v980 = vpack.c.bf16 %v875, %v875
      %v981 = vpack.c.bf16 %v877, %v877
      %v982 = vpack.c.bf16 %v880, %v880
      %v983 = vpack.c.bf16 %v882, %v882
      %v984 = vpack.c.bf16 %v885, %v885
      %v985 = vpack.c.bf16 %v887, %v887
      %v986 = vpack.c.bf16 %v890, %v890
      %v987 = vpack.c.bf16 %v892, %v892
      %v988 = vpack.c.bf16 %v895, %v895
      %v989 = vpack.c.bf16 %v897, %v897
      %v990 = vpack.c.bf16 %v900, %v900
      %v991 = vpack.c.bf16 %v902, %v902
      %v992 = vpack.c.bf16 %v905, %v905
      %v993 = vpack.c.bf16 %v907, %v907
      %v994 = vpack.c.bf16 %v910, %v910
      %v995 = vpack.c.bf16 %v912, %v912
      %v996 = vpack.c.bf16 %v915, %v915
      %v997 = vpack.c.bf16 %v917, %v917
      %v998 = vpack.c.bf16 %v920, %v920
      %v999 = vpack.c.bf16 %v922, %v922
      %v1000 = vpack.c.bf16 %v925, %v925
      %v1001 = vpack.c.bf16 %v927, %v927
      %v1002 = vpack.c.bf16 %v930, %v930
      %v1003 = vpack.c.bf16 %v932, %v932
      %v1004 = vpack.c.bf16 %v935, %v935
      %v1005 = vpack.c.bf16 %v937, %v937
      %v1006 = vpack.c.bf16 %v940, %v940
      %v1007 = vpack.c.bf16 %v942, %v942
      %1008 = vst [vmem:[%s226] sm:$0xf] %v944
      %1009 = vst [vmem:[%s226 + $0x4] sm:$0xf] %v945
      %1010 = vst [vmem:[%s226 + $0x8] sm:$0xf] %v946
      %1011 = vst [vmem:[%s226 + $0xc] sm:$0xf] %v947
      %1012 = vst [vmem:[%s226 + $0x10] sm:$0xf] %v948
      %1013 = vst [vmem:[%s226 + $0x14] sm:$0xf] %v949
      %1014 = vst [vmem:[%s226 + $0x18] sm:$0xf] %v950
      %1015 = vst [vmem:[%s226 + $0x1c] sm:$0xf] %v951
      %1016 = vst [vmem:[%s226 + $0x20] sm:$0xf] %v952
      %1017 = vst [vmem:[%s226 + $0x24] sm:$0xf] %v953
      %1018 = vst [vmem:[%s226 + $0x28] sm:$0xf] %v954
      %1019 = vst [vmem:[%s226 + $0x2c] sm:$0xf] %v955
      %1020 = vst [vmem:[%s226 + $0x30] sm:$0xf] %v956
      %1021 = vst [vmem:[%s226 + $0x34] sm:$0xf] %v957
      %1022 = vst [vmem:[%s226 + $0x38] sm:$0xf] %v958
      %1023 = vst [vmem:[%s226 + $0x3c] sm:$0xf] %v959
      %1024 = vst [vmem:[%s226 + $0x40] sm:$0xf] %v960
      %1025 = vst [vmem:[%s226 + $0x44] sm:$0xf] %v961
      %1026 = vst [vmem:[%s226 + $0x48] sm:$0xf] %v962
      %1027 = vst [vmem:[%s226 + $0x4c] sm:$0xf] %v963
      %1028 = vst [vmem:[%s226 + $0x50] sm:$0xf] %v964
      %1029 = vst [vmem:[%s226 + $0x54] sm:$0xf] %v965
      %1030 = vst [vmem:[%s226 + $0x58] sm:$0xf] %v966
      %1031 = vst [vmem:[%s226 + $0x5c] sm:$0xf] %v967
      %1032 = vst [vmem:[%s226 + $0x60] sm:$0xf] %v968
      %1033 = vst [vmem:[%s226 + $0x64] sm:$0xf] %v969
      %1034 = vst [vmem:[%s226 + $0x68] sm:$0xf] %v970
      %1035 = vst [vmem:[%s226 + $0x6c] sm:$0xf] %v971
      %1036 = vst [vmem:[%s226 + $0x70] sm:$0xf] %v972
      %1037 = vst [vmem:[%s226 + $0x74] sm:$0xf] %v973
      %1038 = vst [vmem:[%s226 + $0x78] sm:$0xf] %v974
      %1039 = vst [vmem:[%s226 + $0x7c] sm:$0xf] %v975
      %1040 = vst [vmem:[%s226 + $0x80] sm:$0xf] %v976
      %1041 = vst [vmem:[%s226 + $0x84] sm:$0xf] %v977
      %1042 = vst [vmem:[%s226 + $0x88] sm:$0xf] %v978
      %1043 = vst [vmem:[%s226 + $0x8c] sm:$0xf] %v979
      %1044 = vst [vmem:[%s226 + $0x90] sm:$0xf] %v980
      %1045 = vst [vmem:[%s226 + $0x94] sm:$0xf] %v981
      %1046 = vst [vmem:[%s226 + $0x98] sm:$0xf] %v982
      %1047 = vst [vmem:[%s226 + $0x9c] sm:$0xf] %v983
      %1048 = vst [vmem:[%s226 + $0xa0] sm:$0xf] %v984
      %1049 = vst [vmem:[%s226 + $0xa4] sm:$0xf] %v985
      %1050 = vst [vmem:[%s226 + $0xa8] sm:$0xf] %v986
      %1051 = vst [vmem:[%s226 + $0xac] sm:$0xf] %v987
      %1052 = vst [vmem:[%s226 + $0xb0] sm:$0xf] %v988
      %1053 = vst [vmem:[%s226 + $0xb4] sm:$0xf] %v989
      %1054 = vst [vmem:[%s226 + $0xb8] sm:$0xf] %v990
      %1055 = vst [vmem:[%s226 + $0xbc] sm:$0xf] %v991
      %1056 = vst [vmem:[%s226 + $0xc0] sm:$0xf] %v992
      %1057 = vst [vmem:[%s226 + $0xc4] sm:$0xf] %v993
      %1058 = vst [vmem:[%s226 + $0xc8] sm:$0xf] %v994
      %1059 = vst [vmem:[%s226 + $0xcc] sm:$0xf] %v995
      %1060 = vst [vmem:[%s226 + $0xd0] sm:$0xf] %v996
      %1061 = vst [vmem:[%s226 + $0xd4] sm:$0xf] %v997
      %1062 = vst [vmem:[%s226 + $0xd8] sm:$0xf] %v998
      %1063 = vst [vmem:[%s226 + $0xdc] sm:$0xf] %v999
      %1064 = vst [vmem:[%s226 + $0xe0] sm:$0xf] %v1000
      %1065 = vst [vmem:[%s226 + $0xe4] sm:$0xf] %v1001
      %1066 = vst [vmem:[%s226 + $0xe8] sm:$0xf] %v1002
      %1067 = vst [vmem:[%s226 + $0xec] sm:$0xf] %v1003
      %1068 = vst [vmem:[%s226 + $0xf0] sm:$0xf] %v1004
      %1069 = vst [vmem:[%s226 + $0xf4] sm:$0xf] %v1005
      %1070 = vst [vmem:[%s226 + $0xf8] sm:$0xf] %v1006
      %1071 = vst [vmem:[%s226 + $0xfc] sm:$0xf] %v1007
      %s1072 = smul.u32 64, %s16
      %p1073 = scmp.lt.s32.totalorder %s1072, 127
      %s1074 = scalar_select %p1073, %s1072, 127
      %s1075 = smul.addr %s1074, 4
      %s1076 = scalar_lea.vmem %s5, %s1075
      // Predicated region
      $region41: #{sequential_mlp_forward.1} parent=39 // pred_check
        %p1077 = pneg %p144
      $region42: #{sequential_mlp_forward.1} parent=39 // pred_check_branch
        %1079 = sbr.rel (%p1077) target = $region44
      $region43: #{sequential_mlp_forward.1} parent=39 // pred_region
        %s1080 = smul.u32 64, %s16
      $region44: #{sequential_mlp_forward.1} parent=39 // pred_fallthru
        _
    $region40: #{sequential_mlp_forward.1} parent=5 // pred_fallthru
      _
    %p1081 = scmp.le.s32.totalorder 2, %s11
    // Predicated region
    $region45: #{sequential_mlp_forward.1} parent=5 // pred_check
      %p1082 = pneg %p1081
    $region46: #{sequential_mlp_forward.1} parent=5 // pred_check_branch
      %1084 = sbr.rel (%p1082) target = $region48
    $region47: #{sequential_mlp_forward.1} parent=5 // pred_region
      %s1085 = ssub.s32 %s11, 2
      // Predicated region
      $region49: #{sequential_mlp_forward.1} parent=47 // pred_check
        %p1086 = pneg %p150
      $region50: #{sequential_mlp_forward.1} parent=47 // pred_check_branch
        %1088 = sbr.rel (%p1086) target = $region52
      $region51: #{sequential_mlp_forward.1} parent=47 // pred_region
        %s1089 = smul.u32 64, %s17
        %p1090 = scmp.lt.s32.totalorder %s1089, 127
        %s1091 = scalar_select %p1090, %s1089, 127
        %s1092 = smul.addr %s1091, 4
        %s1093 = scalar_lea.vmem %s5, %s1092
      $region52: #{sequential_mlp_forward.1} parent=47 // pred_fallthru
        _
    $region48: #{sequential_mlp_forward.1} parent=5 // pred_fallthru
      _
  $region6: #{sequential_mlp_forward.1} parent=0 // loop_footer
    %s15 = sadd.s32 1, %s11
  $region7: #{sequential_mlp_forward.1} parent=0 // loop_footer_branch
    %10 = sbr.rel target = $region3
  $region8: #{sequential_mlp_forward.1} parent=0 // loop_exit
    _

</llo_original>
